<compile_context>
chip_gen: v7x
topology: tpu7x:2x2x1
jax: 0.10.0
libtpu: 0.0.40
codegen_flags: <defaults>
</compile_context>

<pallas_src>
import functools

import jax
import jax.numpy as jnp
from jax.experimental import pallas as pl
from jax.experimental.pallas import tpu as pltpu


# --------------------------------------------------------------------------------------
# Shared math helpers
# --------------------------------------------------------------------------------------
def _layernorm(x, gamma, beta, eps=1e-5):
    mean = jnp.mean(x, axis=-1, keepdims=True)
    var = jnp.mean((x - mean) ** 2, axis=-1, keepdims=True)
    return (x - mean) * jax.lax.rsqrt(var + eps) * gamma + beta


def _erf_poly(x):
    # Abramowitz & Stegun 7.1.26 rational approximation (|err| < 1.5e-7).  Used inside the
    # kernels so the exact-GELU only needs exp / mul / add (guaranteed Mosaic lowerings)
    # while staying "exact" to well below bf16 noise.
    p = 0.3275911
    a1, a2, a3, a4, a5 = 0.254829592, -0.284496736, 1.421413741, -1.453152027, 1.061405429
    z = jnp.abs(x)
    t = 1.0 / (1.0 + p * z)
    poly = ((((a5 * t + a4) * t + a3) * t + a2) * t + a1) * t
    y = 1.0 - poly * jnp.exp(-z * z)
    return jnp.where(x >= 0, y, -y)


def _gelu_exact_in_kernel(x):
    # nn.GELU() default is the exact erf GELU.
    return 0.5 * x * (1.0 + _erf_poly(x * 0.7071067811865476))


def _gelu_exact_ref(x):
    return 0.5 * x * (1.0 + jax.lax.erf(x * 0.7071067811865476))


# --------------------------------------------------------------------------------------
# Pass 1: LN1 + fused per-head QKV projection (computed once per token)
# --------------------------------------------------------------------------------------
def _qkv_kernel(x_ref, ln1g_ref, ln1b_ref, wqkv_ref, q_ref, k_ref, v_ref,
                *, n_head, head_size):
    f32 = jnp.float32
    hs = head_size
    h1 = _layernorm(x_ref[...].astype(f32), ln1g_ref[...], ln1b_ref[...]).astype(jnp.bfloat16)
    # Per-head loop: each dot has N = 3*hs output columns (fused Q|K|V), the widest MXU
    # feed available without cross-lane relayout when hs < 128.  This pass runs once per
    # token (not per (qi, ki) step), so any residual MXU-column waste is off the hot path;
    # per-head live state is one small (TT, 3*hs) tile, so the static unroll cannot spill.
    for h in range(n_head):
        qkv = jnp.dot(h1, wqkv_ref[h], preferred_element_type=f32)        # (TT, 3*hs) f32
        q_ref[h] = qkv[:, :hs].astype(q_ref.dtype)
        k_ref[h] = qkv[:, hs:2 * hs].astype(k_ref.dtype)
        v_ref[h] = qkv[:, 2 * hs:].astype(v_ref.dtype)


# --------------------------------------------------------------------------------------
# Pass 2: flash attention (grid = B, q-tiles, heads, kv-tiles) + out-projection + residual
# --------------------------------------------------------------------------------------
def _attention_kernel(x_ref, q_ref, k_ref, v_ref, wph_ref, bp_ref, o_ref,
                      m_scr, l_scr, acc_scr, out_scr):
    h = pl.program_id(2)
    ki = pl.program_id(3)
    n_head = pl.num_programs(2)
    n_kv = pl.num_programs(3)
    f32 = jnp.float32
    bf16 = jnp.bfloat16

    @pl.when(jnp.logical_and(h == 0, ki == 0))
    def _():
        out_scr[...] = jnp.zeros_like(out_scr)

    @pl.when(ki == 0)
    def _():
        m_scr[...] = jnp.full_like(m_scr, -jnp.inf)
        l_scr[...] = jnp.zeros_like(l_scr)
        acc_scr[...] = jnp.zeros_like(acc_scr)

    # NT-form scores (contract the head dim of both bf16 operands, no k.T materialized);
    # the 1/sqrt(C) attention scale is folded into the query weights in the wrapper.
    s = jax.lax.dot_general(q_ref[...], k_ref[...], (((1,), (1,)), ((), ())),
                            preferred_element_type=f32)                     # (TQ, TK)
    m_prev = m_scr[...]
    m_new = jnp.maximum(m_prev, jnp.max(s, axis=-1, keepdims=True))
    alpha = jnp.exp(m_prev - m_new)
    p = jnp.exp(s - m_new)          # f32 softmax math (v5e-safe)
    l_scr[...] = alpha * l_scr[...] + jnp.sum(p, axis=-1, keepdims=True)
    acc_scr[...] = alpha * acc_scr[...] + jnp.dot(p.astype(bf16), v_ref[...],
                                                  preferred_element_type=f32)
    m_scr[...] = m_new

    @pl.when(ki == n_kv - 1)
    def _():
        # Exact normalization (finalize-only; approx reciprocal would buy nothing here).
        att = acc_scr[...] / l_scr[...]                                     # (TQ, hs)
        # Linearity of the output projection: sum_h att_h @ wp[h*hs:(h+1)*hs, :] (no
        # concat); N = C -> lane-dense MXU feed accumulated into a (TQ, C) buffer.
        out_scr[...] += jnp.dot(att.astype(bf16), wph_ref[...], preferred_element_type=f32)

    @pl.when(jnp.logical_and(h == n_head - 1, ki == n_kv - 1))
    def _():
        o_ref[...] = (x_ref[...].astype(f32) + out_scr[...] + bp_ref[...]).astype(o_ref.dtype)


# --------------------------------------------------------------------------------------
# Pass 3: LN2 + FFN (hidden axis optionally tiled as a reduction grid axis) + residual
# --------------------------------------------------------------------------------------
def _ffn_kernel(x1_ref, ln2g_ref, ln2b_ref, w1_ref, b1_ref, w2_ref, b2_ref, o_ref,
                h2_scr, ff_scr):
    hi = pl.program_id(2)
    n_hid = pl.num_programs(2)
    f32 = jnp.float32

    @pl.when(hi == 0)
    def _():
        x1 = x1_ref[...].astype(f32)
        h2_scr[...] = _layernorm(x1, ln2g_ref[...], ln2b_ref[...]).astype(h2_scr.dtype)
        ff_scr[...] = jnp.zeros_like(ff_scr)

    hid = jnp.dot(h2_scr[...], w1_ref[...], preferred_element_type=f32) + b1_ref[...]
    hid = _gelu_exact_in_kernel(hid)
    ff_scr[...] += jnp.dot(hid.astype(jnp.bfloat16), w2_ref[...], preferred_element_type=f32)

    @pl.when(hi == n_hid - 1)
    def _():
        o_ref[...] = (x1_ref[...].astype(f32) + ff_scr[...] + b2_ref[...]).astype(o_ref.dtype)


# --------------------------------------------------------------------------------------
# Wrapper / tiling heuristics
# --------------------------------------------------------------------------------------
def _pick_seq_tile(t):
    # Prefer large, MXU/vreg-friendly sequence tiles (512 amortizes the ~0.35us per-step
    # overhead); fall back to the full extent for small / non-divisible T (a block equal
    # to the full dim is exempt from the (8,128) divisibility rule).
    for cand in (512, 256, 128):
        if t % cand == 0:
            return cand
    return t


def _vmem_limit_bytes():
    # Derive the scoped-VMEM limit from the actual part instead of hardcoding a physical
    # size; leave ~25% headroom (v5e/v6e: 96 MiB of 128; v7x: 48 MiB of 64).
    try:
        cap = int(pltpu.get_tpu_info().vmem_capacity_bytes)
    except Exception:
        cap = 64 * 1024 * 1024
    return (cap // 4) * 3


def _pick_hidden_tile(c, hidden, vmem_limit):
    # Keep the FFN weights resident (single hidden block -> never re-streamed) when the
    # double-buffered (C, HT) + (HT, C) bf16 slabs fit comfortably; otherwise tile the
    # hidden axis (bounds VMEM on 64 MiB parts / very large C, per the review).
    def w_bytes(ht):
        return 2 * (c * ht * 2 + ht * c * 2)      # 2 weight blocks, bf16, double-buffered
    budget = vmem_limit // 2
    if w_bytes(hidden) <= budget:
        return hidden
    for cand in (2048, 1024, 512, 256, 128):
        if hidden % cand == 0 and w_bytes(cand) <= budget:
            return cand
    return hidden


def transformer_block(x, params, n_head):
    B, T, C = x.shape
    (ln1g, ln1b, wq, wk, wv, wp, bp, ln2g, ln2b, w1, b1, w2, b2) = params
    assert C % n_head == 0
    H, hs = n_head, C // n_head
    bf16 = jnp.bfloat16
    vmem_limit = _vmem_limit_bytes()

    # ---- weight prep (wrapper side, free): per-head slabs, bf16 MXU operands, attention
    # ---- scale C**-0.5 (full embed dim, as in the PyTorch module) folded into wq.
    scale = float(C) ** -0.5

    def head_cols(w):                 # (C, C) -> (H, C, hs); head h = cols [h*hs, (h+1)*hs)
        return w.reshape(C, H, hs).transpose(1, 0, 2)

    wqkv = jnp.concatenate([head_cols(wq * scale), head_cols(wk), head_cols(wv)],
                           axis=-1).astype(bf16)              # (H, C, 3*hs)
    wph = wp.reshape(H, hs, C).astype(bf16)                   # head h = rows [h*hs, (h+1)*hs)
    w1b = w1.astype(bf16)
    w2b = w2.astype(bf16)

    # ------------------------- pass 1: LN1 + fused QKV projection -------------------------
    TT = _pick_seq_tile(T)
    NT = T // TT
    qkv_shape = jax.ShapeDtypeStruct((B, H, T, hs), bf16)
    qkv_out_spec = pl.BlockSpec((None, H, TT, hs), lambda b, t: (b, 0, t, 0))
    q, k, v = pl.pallas_call(
        functools.partial(_qkv_kernel, n_head=H, head_size=hs),
        out_shape=(qkv_shape, qkv_shape, qkv_shape),
        grid_spec=pltpu.PrefetchScalarGridSpec(
            num_scalar_prefetch=0,
            grid=(B, NT),
            in_specs=[
                pl.BlockSpec((None, TT, C), lambda b, t: (b, t, 0)),          # x tile
                pl.BlockSpec((1, C), lambda b, t: (0, 0)),                    # ln1 gamma
                pl.BlockSpec((1, C), lambda b, t: (0, 0)),                    # ln1 beta
                pl.BlockSpec((H, C, 3 * hs), lambda b, t: (0, 0, 0)),         # fused qkv w
            ],
            out_specs=(qkv_out_spec, qkv_out_spec, qkv_out_spec),
        ),
        compiler_params=pltpu.CompilerParams(
            dimension_semantics=("parallel", "parallel"),
            vmem_limit_bytes=vmem_limit,
        ),
        cost_estimate=pl.CostEstimate(
            flops=int(6 * B * T * C * C),
            transcendentals=int(B * T),
            bytes_accessed=int(B * T * C * 4 + 3 * B * T * C * 2 + 3 * C * C * 2),
        ),
    )(x, ln1g, ln1b, wqkv)

    # --------------------- pass 2: flash attention + projection + residual ----------------
    TQ = _pick_seq_tile(T)
    TK = _pick_seq_tile(T)
    NQ, NK = T // TQ, T // TK
    attn_bytes = (B * T * C * 4              # x (residual)
                  + B * T * C * 2            # q (bf16)
                  + 2 * B * NQ * T * C * 2   # k, v re-streamed NQ times (bf16)
                  + B * T * C * 4            # x1 out
                  + C * C * 2 + C * 4)       # wp, bp
    x1 = pl.pallas_call(
        _attention_kernel,
        out_shape=jax.ShapeDtypeStruct((B, T, C), jnp.float32),
        grid_spec=pltpu.PrefetchScalarGridSpec(
            num_scalar_prefetch=0,
            grid=(B, NQ, H, NK),
            in_specs=[
                pl.BlockSpec((None, TQ, C), lambda b, qi, h, ki: (b, qi, 0)),            # x
                pl.BlockSpec((None, None, TQ, hs), lambda b, qi, h, ki: (b, h, qi, 0)),  # q
                pl.BlockSpec((None, None, TK, hs), lambda b, qi, h, ki: (b, h, ki, 0)),  # k
                pl.BlockSpec((None, None, TK, hs), lambda b, qi, h, ki: (b, h, ki, 0)),  # v
                pl.BlockSpec((None, hs, C), lambda b, qi, h, ki: (h, 0, 0)),             # wp_h
                pl.BlockSpec((1, C), lambda b, qi, h, ki: (0, 0)),                       # bp
            ],
            out_specs=pl.BlockSpec((None, TQ, C), lambda b, qi, h, ki: (b, qi, 0)),
            scratch_shapes=[
                pltpu.VMEM((TQ, 1), jnp.float32),    # running max (current head)
                pltpu.VMEM((TQ, 1), jnp.float32),    # running sum (current head)
                pltpu.VMEM((TQ, hs), jnp.float32),   # un-normalized attention (current head)
                pltpu.VMEM((TQ, C), jnp.float32),    # projected multi-head out (lane-dense)
            ],
        ),
        compiler_params=pltpu.CompilerParams(
            dimension_semantics=("parallel", "parallel", "arbitrary", "arbitrary"),
            vmem_limit_bytes=vmem_limit,
        ),
        cost_estimate=pl.CostEstimate(
            flops=int(4 * B * T * T * C + 2 * B * T * C * C),
            transcendentals=int(B * H * T * T),
            bytes_accessed=int(attn_bytes),
        ),
    )(x, q, k, v, wph, bp)

    # ----------------------------- pass 3: LN2 + FFN + residual ---------------------------
    TF = _pick_seq_tile(T)
    NF = T // TF
    hidden = 4 * C
    HT = _pick_hidden_tile(C, hidden, vmem_limit)
    NH = hidden // HT
    w_reads = B * NF if NH > 1 else 1
    out = pl.pallas_call(
        _ffn_kernel,
        out_shape=jax.ShapeDtypeStruct((B, T, C), x.dtype),
        grid_spec=pltpu.PrefetchScalarGridSpec(
            num_scalar_prefetch=0,
            grid=(B, NF, NH),
            in_specs=[
                pl.BlockSpec((None, TF, C), lambda b, t, hi: (b, t, 0)),      # x1 tile
                pl.BlockSpec((1, C), lambda b, t, hi: (0, 0)),                # ln2 gamma
                pl.BlockSpec((1, C), lambda b, t, hi: (0, 0)),                # ln2 beta
                pl.BlockSpec((C, HT), lambda b, t, hi: (0, hi)),              # w1 chunk
                pl.BlockSpec((1, HT), lambda b, t, hi: (0, hi)),              # b1 chunk
                pl.BlockSpec((HT, C), lambda b, t, hi: (hi, 0)),              # w2 chunk
                pl.BlockSpec((1, C), lambda b, t, hi: (0, 0)),                # b2
            ],
            out_specs=pl.BlockSpec((None, TF, C), lambda b, t, hi: (b, t, 0)),
            scratch_shapes=[
                pltpu.VMEM((TF, C), jnp.bfloat16),   # LN2(x1), computed once per tile
                pltpu.VMEM((TF, C), jnp.float32),    # FFN accumulator over hidden chunks
            ],
        ),
        compiler_params=pltpu.CompilerParams(
            dimension_semantics=("parallel", "parallel", "arbitrary"),
            vmem_limit_bytes=vmem_limit,
        ),
        cost_estimate=pl.CostEstimate(
            flops=int(16 * B * T * C * C),
            transcendentals=int(4 * B * T * C),
            bytes_accessed=int(2 * B * T * C * 4 + w_reads * 8 * C * C * 2),
        ),
    )(x1, ln2g, ln2b, w1b, b1, w2b, b2)
    return out


# --------------------------------------------------------------------------------------
# Pure-JAX exact-f32 reference (mirrors the PyTorch forward pass) and parameter builder
# --------------------------------------------------------------------------------------
def reference_block(x, params, n_head):
    (ln1g, ln1b, wq, wk, wv, wp, bp, ln2g, ln2b, w1, b1, w2, b2) = params
    B, T, C = x.shape
    hs = C // n_head
    h_in = _layernorm(x, ln1g, ln1b)
    q = h_in @ wq
    k = h_in @ wk
    v = h_in @ wv
    outs = []
    for h in range(n_head):
        qh = q[..., h * hs:(h + 1) * hs]
        kh = k[..., h * hs:(h + 1) * hs]
        vh = v[..., h * hs:(h + 1) * hs]
        wei = jnp.einsum("btd,bsd->bts", qh, kh) * (C ** -0.5)
        wei = jax.nn.softmax(wei, axis=-1)
        outs.append(jnp.einsum("bts,bsd->btd", wei, vh))
    att = jnp.concatenate(outs, axis=-1)
    x1 = x + att @ wp + bp
    h2 = _layernorm(x1, ln2g, ln2b)
    ff = _gelu_exact_ref(h2 @ w1 + b1) @ w2 + b2
    return x1 + ff


def make_params(key, n_embd, n_head):
    C = n_embd
    ks = jax.random.split(key, 12)
    std = 0.02
    ln1g = 1.0 + 0.1 * jax.random.normal(ks[0], (1, C), jnp.float32)
    ln1b = 0.1 * jax.random.normal(ks[1], (1, C), jnp.float32)
    wq = std * jax.random.normal(ks[2], (C, C), jnp.float32)
    wk = std * jax.random.normal(ks[3], (C, C), jnp.float32)
    wv = std * jax.random.normal(ks[4], (C, C), jnp.float32)
    wp = std * jax.random.normal(ks[5], (C, C), jnp.float32)
    bp = 0.1 * jax.random.normal(ks[6], (1, C), jnp.float32)
    ln2g = 1.0 + 0.1 * jax.random.normal(ks[7], (1, C), jnp.float32)
    ln2b = 0.1 * jax.random.normal(ks[8], (1, C), jnp.float32)
    w1 = std * jax.random.normal(ks[9], (C, 4 * C), jnp.float32)
    b1 = 0.1 * jax.random.normal(ks[10], (1, 4 * C), jnp.float32)
    w2 = std * jax.random.normal(ks[11], (4 * C, C), jnp.float32)
    b2 = jnp.zeros((1, C), jnp.float32)
    return (ln1g, ln1b, wq, wk, wv, wp, bp, ln2g, ln2b, w1, b1, w2, b2)


if __name__ == "__main__":
    key = jax.random.PRNGKey(0)

    def run_case(B, T, n_embd, n_head, k):
        kx, kp = jax.random.split(k)
        x = jax.random.normal(kx, (B, T, n_embd), jnp.float32)
        params = make_params(kp, n_embd, n_head)
        out = jax.block_until_ready(transformer_block(x, params, n_head))
        ref = jax.block_until_ready(reference_block(x, params, n_head))
        assert out.shape == (B, T, n_embd)
        max_err = float(jnp.max(jnp.abs(out - ref)))
        # bf16 MXU operands (weights + activation feeds) with f32 accumulation; softmax and
        # normalization are exact f32, so 1e-2 is comfortable for these magnitudes.
        assert jnp.allclose(out, ref, atol=1e-2, rtol=1e-2), (
            f"case B={B} T={T} C={n_embd} H={n_head}: max abs err {max_err}")

    k1, k2 = jax.random.split(key)
    # Small shapes (single tile per pass, full-extent blocks).
    run_case(2, 8, 32, 4, k1)
    # Multi-tile path: TQ=TK=512 -> NQ=NK=2, hs=64, (8,128)-aligned blocks.  Exercises the
    # online softmax across kv tiles, the -inf init, and the head grid axis (review concern).
    run_case(1, 1024, 256, 4, k2)
    print("KERNEL_OK")
</pallas_src>

<mosaic_0001>
module attributes {stable_mosaic.version = 11 : i64} {
  func.func @_qkv_kernel(%arg0: i32, %arg1: i32, %arg2: memref<1x8x32xf32, #tpu.memory_space<vmem>>, %arg3: memref<1x32xf32, #tpu.memory_space<vmem>>, %arg4: memref<1x32xf32, #tpu.memory_space<vmem>>, %arg5: memref<4x32x24xbf16, #tpu.memory_space<vmem>>, %arg6: memref<1x4x8x8xbf16, #tpu.memory_space<vmem>>, %arg7: memref<1x4x8x8xbf16, #tpu.memory_space<vmem>>, %arg8: memref<1x4x8x8xbf16, #tpu.memory_space<vmem>>) attributes {dimension_semantics = [#tpu.dimension_semantics<parallel>, #tpu.dimension_semantics<parallel>], iteration_bounds = array<i64: 2, 1>, scalar_prefetch = 0 : i64, scratch_operands = 0 : i64, tpu.core_type = #tpu.core_type<tc>, window_params = [{transform_indices = @transform_0, window_bounds = array<i64: 1, 8, 32>}, {pipeline_mode = #tpu.pipeline_mode<synchronous>, transform_indices = @transform_1, window_bounds = array<i64: 1, 32>}, {pipeline_mode = #tpu.pipeline_mode<synchronous>, transform_indices = @transform_2, window_bounds = array<i64: 1, 32>}, {pipeline_mode = #tpu.pipeline_mode<synchronous>, transform_indices = @transform_3, window_bounds = array<i64: 4, 32, 24>}, {transform_indices = @transform_4, window_bounds = array<i64: 1, 4, 8, 8>}, {transform_indices = @transform_5, window_bounds = array<i64: 1, 4, 8, 8>}, {transform_indices = @transform_6, window_bounds = array<i64: 1, 4, 8, 8>}]} {
    %c0 = arith.constant 0 : index
    %c0_0 = arith.constant 0 : index
    %c0_1 = arith.constant 0 : index
    %0 = vector.load %arg2[%c0, %c0_0, %c0_1] : memref<1x8x32xf32, #tpu.memory_space<vmem>>, vector<1x8x32xf32>
    %1 = vector.shape_cast %0 : vector<1x8x32xf32> to vector<8x32xf32>
    %c0_2 = arith.constant 0 : index
    %c0_3 = arith.constant 0 : index
    %2 = vector.load %arg3[%c0_2, %c0_3] : memref<1x32xf32, #tpu.memory_space<vmem>>, vector<1x32xf32>
    %c0_4 = arith.constant 0 : index
    %c0_5 = arith.constant 0 : index
    %3 = vector.load %arg4[%c0_4, %c0_5] : memref<1x32xf32, #tpu.memory_space<vmem>>, vector<1x32xf32>
    %cst = arith.constant dense<0.000000e+00> : vector<8xf32>
    %4 = vector.multi_reduction <add>, %1, %cst [1] : vector<8x32xf32> to vector<8xf32>
    %5 = vector.shape_cast %4 : vector<8xf32> to vector<8x1xf32>
    %cst_6 = arith.constant 3.200000e+01 : f32
    %6 = vector.broadcast %cst_6 : f32 to vector<8x1xf32>
    %7 = arith.divf %5, %6 : vector<8x1xf32>
    %8 = vector.broadcast %7 : vector<8x1xf32> to vector<8x32xf32>
    %9 = arith.subf %1, %8 : vector<8x32xf32>
    %10 = arith.mulf %9, %9 : vector<8x32xf32>
    %cst_7 = arith.constant dense<0.000000e+00> : vector<8xf32>
    %11 = vector.multi_reduction <add>, %10, %cst_7 [1] : vector<8x32xf32> to vector<8xf32>
    %12 = vector.shape_cast %11 : vector<8xf32> to vector<8x1xf32>
    %cst_8 = arith.constant 3.200000e+01 : f32
    %13 = vector.broadcast %cst_8 : f32 to vector<8x1xf32>
    %14 = arith.divf %12, %13 : vector<8x1xf32>
    %15 = vector.broadcast %7 : vector<8x1xf32> to vector<8x32xf32>
    %16 = arith.subf %1, %15 : vector<8x32xf32>
    %cst_9 = arith.constant 9.99999974E-6 : f32
    %17 = vector.broadcast %cst_9 : f32 to vector<8x1xf32>
    %18 = arith.addf %14, %17 : vector<8x1xf32>
    %19 = math.rsqrt %18 : vector<8x1xf32>
    %20 = vector.broadcast %19 : vector<8x1xf32> to vector<8x32xf32>
    %21 = arith.mulf %16, %20 : vector<8x32xf32>
    %22 = vector.broadcast %2 : vector<1x32xf32> to vector<8x32xf32>
    %23 = arith.mulf %21, %22 : vector<8x32xf32>
    %24 = vector.broadcast %3 : vector<1x32xf32> to vector<8x32xf32>
    %25 = arith.addf %23, %24 : vector<8x32xf32>
    %26 = arith.truncf %25 : vector<8x32xf32> to vector<8x32xbf16>
    %c0_10 = arith.constant 0 : index
    %c0_11 = arith.constant 0 : index
    %c0_12 = arith.constant 0 : index
    %27 = vector.load %arg5[%c0_10, %c0_11, %c0_12] : memref<4x32x24xbf16, #tpu.memory_space<vmem>>, vector<1x32x24xbf16>
    %28 = vector.shape_cast %27 : vector<1x32x24xbf16> to vector<32x24xbf16>
    %cst_13 = arith.constant dense<0.000000e+00> : vector<8x24xf32>
    %29 = tpu.matmul %26, %28, %cst_13 {dimension_numbers = #tpu.dot_dimension_numbers<[1], [0], [0], [1], [0, 0, 1, 1], [], []>} : vector<8x32xbf16>, vector<32x24xbf16>, vector<8x24xf32> -> vector<8x24xf32>
    %30 = vector.extract_strided_slice %29 {offsets = [0, 0], sizes = [8, 8], strides = [1, 1]} : vector<8x24xf32> to vector<8x8xf32>
    %31 = arith.truncf %30 : vector<8x8xf32> to vector<8x8xbf16>
    %c0_14 = arith.constant 0 : index
    %c0_15 = arith.constant 0 : index
    %c0_16 = arith.constant 0 : index
    %c0_17 = arith.constant 0 : index
    %32 = vector.load %arg6[%c0_14, %c0_15, %c0_16, %c0_17] : memref<1x4x8x8xbf16, #tpu.memory_space<vmem>>, vector<1x1x8x8xbf16>
    %33 = vector.shape_cast %32 : vector<1x1x8x8xbf16> to vector<8x8xbf16>
    %34 = vector.shape_cast %31 : vector<8x8xbf16> to vector<1x1x8x8xbf16>
    tpu.vector_store %arg6[%c0_14, %c0_15, %c0_16, %c0_17], %34 {strides = array<i32>} : memref<1x4x8x8xbf16, #tpu.memory_space<vmem>>, vector<1x1x8x8xbf16>,
    %35 = vector.extract_strided_slice %29 {offsets = [0, 8], sizes = [8, 8], strides = [1, 1]} : vector<8x24xf32> to vector<8x8xf32>
    %36 = arith.truncf %35 : vector<8x8xf32> to vector<8x8xbf16>
    %c0_18 = arith.constant 0 : index
    %c0_19 = arith.constant 0 : index
    %c0_20 = arith.constant 0 : index
    %c0_21 = arith.constant 0 : index
    %37 = vector.load %arg7[%c0_18, %c0_19, %c0_20, %c0_21] : memref<1x4x8x8xbf16, #tpu.memory_space<vmem>>, vector<1x1x8x8xbf16>
    %38 = vector.shape_cast %37 : vector<1x1x8x8xbf16> to vector<8x8xbf16>
    %39 = vector.shape_cast %36 : vector<8x8xbf16> to vector<1x1x8x8xbf16>
    tpu.vector_store %arg7[%c0_18, %c0_19, %c0_20, %c0_21], %39 {strides = array<i32>} : memref<1x4x8x8xbf16, #tpu.memory_space<vmem>>, vector<1x1x8x8xbf16>,
    %40 = vector.extract_strided_slice %29 {offsets = [0, 16], sizes = [8, 8], strides = [1, 1]} : vector<8x24xf32> to vector<8x8xf32>
    %41 = arith.truncf %40 : vector<8x8xf32> to vector<8x8xbf16>
    %c0_22 = arith.constant 0 : index
    %c0_23 = arith.constant 0 : index
    %c0_24 = arith.constant 0 : index
    %c0_25 = arith.constant 0 : index
    %42 = vector.load %arg8[%c0_22, %c0_23, %c0_24, %c0_25] : memref<1x4x8x8xbf16, #tpu.memory_space<vmem>>, vector<1x1x8x8xbf16>
    %43 = vector.shape_cast %42 : vector<1x1x8x8xbf16> to vector<8x8xbf16>
    %44 = vector.shape_cast %41 : vector<8x8xbf16> to vector<1x1x8x8xbf16>
    tpu.vector_store %arg8[%c0_22, %c0_23, %c0_24, %c0_25], %44 {strides = array<i32>} : memref<1x4x8x8xbf16, #tpu.memory_space<vmem>>, vector<1x1x8x8xbf16>,
    %c1 = arith.constant 1 : index
    %c0_26 = arith.constant 0 : index
    %c0_27 = arith.constant 0 : index
    %45 = vector.load %arg5[%c1, %c0_26, %c0_27] : memref<4x32x24xbf16, #tpu.memory_space<vmem>>, vector<1x32x24xbf16>
    %46 = vector.shape_cast %45 : vector<1x32x24xbf16> to vector<32x24xbf16>
    %cst_28 = arith.constant dense<0.000000e+00> : vector<8x24xf32>
    %47 = tpu.matmul %26, %46, %cst_28 {dimension_numbers = #tpu.dot_dimension_numbers<[1], [0], [0], [1], [0, 0, 1, 1], [], []>} : vector<8x32xbf16>, vector<32x24xbf16>, vector<8x24xf32> -> vector<8x24xf32>
    %48 = vector.extract_strided_slice %47 {offsets = [0, 0], sizes = [8, 8], strides = [1, 1]} : vector<8x24xf32> to vector<8x8xf32>
    %49 = arith.truncf %48 : vector<8x8xf32> to vector<8x8xbf16>
    %c0_29 = arith.constant 0 : index
    %c1_30 = arith.constant 1 : index
    %c0_31 = arith.constant 0 : index
    %c0_32 = arith.constant 0 : index
    %50 = vector.load %arg6[%c0_29, %c1_30, %c0_31, %c0_32] : memref<1x4x8x8xbf16, #tpu.memory_space<vmem>>, vector<1x1x8x8xbf16>
    %51 = vector.shape_cast %50 : vector<1x1x8x8xbf16> to vector<8x8xbf16>
    %52 = vector.shape_cast %49 : vector<8x8xbf16> to vector<1x1x8x8xbf16>
    tpu.vector_store %arg6[%c0_29, %c1_30, %c0_31, %c0_32], %52 {strides = array<i32>} : memref<1x4x8x8xbf16, #tpu.memory_space<vmem>>, vector<1x1x8x8xbf16>,
    %53 = vector.extract_strided_slice %47 {offsets = [0, 8], sizes = [8, 8], strides = [1, 1]} : vector<8x24xf32> to vector<8x8xf32>
    %54 = arith.truncf %53 : vector<8x8xf32> to vector<8x8xbf16>
    %c0_33 = arith.constant 0 : index
    %c1_34 = arith.constant 1 : index
    %c0_35 = arith.constant 0 : index
    %c0_36 = arith.constant 0 : index
    %55 = vector.load %arg7[%c0_33, %c1_34, %c0_35, %c0_36] : memref<1x4x8x8xbf16, #tpu.memory_space<vmem>>, vector<1x1x8x8xbf16>
    %56 = vector.shape_cast %55 : vector<1x1x8x8xbf16> to vector<8x8xbf16>
    %57 = vector.shape_cast %54 : vector<8x8xbf16> to vector<1x1x8x8xbf16>
    tpu.vector_store %arg7[%c0_33, %c1_34, %c0_35, %c0_36], %57 {strides = array<i32>} : memref<1x4x8x8xbf16, #tpu.memory_space<vmem>>, vector<1x1x8x8xbf16>,
    %58 = vector.extract_strided_slice %47 {offsets = [0, 16], sizes = [8, 8], strides = [1, 1]} : vector<8x24xf32> to vector<8x8xf32>
    %59 = arith.truncf %58 : vector<8x8xf32> to vector<8x8xbf16>
    %c0_37 = arith.constant 0 : index
    %c1_38 = arith.constant 1 : index
    %c0_39 = arith.constant 0 : index
    %c0_40 = arith.constant 0 : index
    %60 = vector.load %arg8[%c0_37, %c1_38, %c0_39, %c0_40] : memref<1x4x8x8xbf16, #tpu.memory_space<vmem>>, vector<1x1x8x8xbf16>
    %61 = vector.shape_cast %60 : vector<1x1x8x8xbf16> to vector<8x8xbf16>
    %62 = vector.shape_cast %59 : vector<8x8xbf16> to vector<1x1x8x8xbf16>
    tpu.vector_store %arg8[%c0_37, %c1_38, %c0_39, %c0_40], %62 {strides = array<i32>} : memref<1x4x8x8xbf16, #tpu.memory_space<vmem>>, vector<1x1x8x8xbf16>,
    %c2 = arith.constant 2 : index
    %c0_41 = arith.constant 0 : index
    %c0_42 = arith.constant 0 : index
    %63 = vector.load %arg5[%c2, %c0_41, %c0_42] : memref<4x32x24xbf16, #tpu.memory_space<vmem>>, vector<1x32x24xbf16>
    %64 = vector.shape_cast %63 : vector<1x32x24xbf16> to vector<32x24xbf16>
    %cst_43 = arith.constant dense<0.000000e+00> : vector<8x24xf32>
    %65 = tpu.matmul %26, %64, %cst_43 {dimension_numbers = #tpu.dot_dimension_numbers<[1], [0], [0], [1], [0, 0, 1, 1], [], []>} : vector<8x32xbf16>, vector<32x24xbf16>, vector<8x24xf32> -> vector<8x24xf32>
    %66 = vector.extract_strided_slice %65 {offsets = [0, 0], sizes = [8, 8], strides = [1, 1]} : vector<8x24xf32> to vector<8x8xf32>
    %67 = arith.truncf %66 : vector<8x8xf32> to vector<8x8xbf16>
    %c0_44 = arith.constant 0 : index
    %c2_45 = arith.constant 2 : index
    %c0_46 = arith.constant 0 : index
    %c0_47 = arith.constant 0 : index
    %68 = vector.load %arg6[%c0_44, %c2_45, %c0_46, %c0_47] : memref<1x4x8x8xbf16, #tpu.memory_space<vmem>>, vector<1x1x8x8xbf16>
    %69 = vector.shape_cast %68 : vector<1x1x8x8xbf16> to vector<8x8xbf16>
    %70 = vector.shape_cast %67 : vector<8x8xbf16> to vector<1x1x8x8xbf16>
    tpu.vector_store %arg6[%c0_44, %c2_45, %c0_46, %c0_47], %70 {strides = array<i32>} : memref<1x4x8x8xbf16, #tpu.memory_space<vmem>>, vector<1x1x8x8xbf16>,
    %71 = vector.extract_strided_slice %65 {offsets = [0, 8], sizes = [8, 8], strides = [1, 1]} : vector<8x24xf32> to vector<8x8xf32>
    %72 = arith.truncf %71 : vector<8x8xf32> to vector<8x8xbf16>
    %c0_48 = arith.constant 0 : index
    %c2_49 = arith.constant 2 : index
    %c0_50 = arith.constant 0 : index
    %c0_51 = arith.constant 0 : index
    %73 = vector.load %arg7[%c0_48, %c2_49, %c0_50, %c0_51] : memref<1x4x8x8xbf16, #tpu.memory_space<vmem>>, vector<1x1x8x8xbf16>
    %74 = vector.shape_cast %73 : vector<1x1x8x8xbf16> to vector<8x8xbf16>
    %75 = vector.shape_cast %72 : vector<8x8xbf16> to vector<1x1x8x8xbf16>
    tpu.vector_store %arg7[%c0_48, %c2_49, %c0_50, %c0_51], %75 {strides = array<i32>} : memref<1x4x8x8xbf16, #tpu.memory_space<vmem>>, vector<1x1x8x8xbf16>,
    %76 = vector.extract_strided_slice %65 {offsets = [0, 16], sizes = [8, 8], strides = [1, 1]} : vector<8x24xf32> to vector<8x8xf32>
    %77 = arith.truncf %76 : vector<8x8xf32> to vector<8x8xbf16>
    %c0_52 = arith.constant 0 : index
    %c2_53 = arith.constant 2 : index
    %c0_54 = arith.constant 0 : index
    %c0_55 = arith.constant 0 : index
    %78 = vector.load %arg8[%c0_52, %c2_53, %c0_54, %c0_55] : memref<1x4x8x8xbf16, #tpu.memory_space<vmem>>, vector<1x1x8x8xbf16>
    %79 = vector.shape_cast %78 : vector<1x1x8x8xbf16> to vector<8x8xbf16>
    %80 = vector.shape_cast %77 : vector<8x8xbf16> to vector<1x1x8x8xbf16>
    tpu.vector_store %arg8[%c0_52, %c2_53, %c0_54, %c0_55], %80 {strides = array<i32>} : memref<1x4x8x8xbf16, #tpu.memory_space<vmem>>, vector<1x1x8x8xbf16>,
    %c3 = arith.constant 3 : index
    %c0_56 = arith.constant 0 : index
    %c0_57 = arith.constant 0 : index
    %81 = vector.load %arg5[%c3, %c0_56, %c0_57] : memref<4x32x24xbf16, #tpu.memory_space<vmem>>, vector<1x32x24xbf16>
    %82 = vector.shape_cast %81 : vector<1x32x24xbf16> to vector<32x24xbf16>
    %cst_58 = arith.constant dense<0.000000e+00> : vector<8x24xf32>
    %83 = tpu.matmul %26, %82, %cst_58 {dimension_numbers = #tpu.dot_dimension_numbers<[1], [0], [0], [1], [0, 0, 1, 1], [], []>} : vector<8x32xbf16>, vector<32x24xbf16>, vector<8x24xf32> -> vector<8x24xf32>
    %84 = vector.extract_strided_slice %83 {offsets = [0, 0], sizes = [8, 8], strides = [1, 1]} : vector<8x24xf32> to vector<8x8xf32>
    %85 = arith.truncf %84 : vector<8x8xf32> to vector<8x8xbf16>
    %c0_59 = arith.constant 0 : index
    %c3_60 = arith.constant 3 : index
    %c0_61 = arith.constant 0 : index
    %c0_62 = arith.constant 0 : index
    %86 = vector.load %arg6[%c0_59, %c3_60, %c0_61, %c0_62] : memref<1x4x8x8xbf16, #tpu.memory_space<vmem>>, vector<1x1x8x8xbf16>
    %87 = vector.shape_cast %86 : vector<1x1x8x8xbf16> to vector<8x8xbf16>
    %88 = vector.shape_cast %85 : vector<8x8xbf16> to vector<1x1x8x8xbf16>
    tpu.vector_store %arg6[%c0_59, %c3_60, %c0_61, %c0_62], %88 {strides = array<i32>} : memref<1x4x8x8xbf16, #tpu.memory_space<vmem>>, vector<1x1x8x8xbf16>,
    %89 = vector.extract_strided_slice %83 {offsets = [0, 8], sizes = [8, 8], strides = [1, 1]} : vector<8x24xf32> to vector<8x8xf32>
    %90 = arith.truncf %89 : vector<8x8xf32> to vector<8x8xbf16>
    %c0_63 = arith.constant 0 : index
    %c3_64 = arith.constant 3 : index
    %c0_65 = arith.constant 0 : index
    %c0_66 = arith.constant 0 : index
    %91 = vector.load %arg7[%c0_63, %c3_64, %c0_65, %c0_66] : memref<1x4x8x8xbf16, #tpu.memory_space<vmem>>, vector<1x1x8x8xbf16>
    %92 = vector.shape_cast %91 : vector<1x1x8x8xbf16> to vector<8x8xbf16>
    %93 = vector.shape_cast %90 : vector<8x8xbf16> to vector<1x1x8x8xbf16>
    tpu.vector_store %arg7[%c0_63, %c3_64, %c0_65, %c0_66], %93 {strides = array<i32>} : memref<1x4x8x8xbf16, #tpu.memory_space<vmem>>, vector<1x1x8x8xbf16>,
    %94 = vector.extract_strided_slice %83 {offsets = [0, 16], sizes = [8, 8], strides = [1, 1]} : vector<8x24xf32> to vector<8x8xf32>
    %95 = arith.truncf %94 : vector<8x8xf32> to vector<8x8xbf16>
    %c0_67 = arith.constant 0 : index
    %c3_68 = arith.constant 3 : index
    %c0_69 = arith.constant 0 : index
    %c0_70 = arith.constant 0 : index
    %96 = vector.load %arg8[%c0_67, %c3_68, %c0_69, %c0_70] : memref<1x4x8x8xbf16, #tpu.memory_space<vmem>>, vector<1x1x8x8xbf16>
    %97 = vector.shape_cast %96 : vector<1x1x8x8xbf16> to vector<8x8xbf16>
    %98 = vector.shape_cast %95 : vector<8x8xbf16> to vector<1x1x8x8xbf16>
    tpu.vector_store %arg8[%c0_67, %c3_68, %c0_69, %c0_70], %98 {strides = array<i32>} : memref<1x4x8x8xbf16, #tpu.memory_space<vmem>>, vector<1x1x8x8xbf16>,
    return
  }
  func.func @transform_0(%arg0: i32, %arg1: i32) -> (i32, i32, i32) {
    %c0_i32 = arith.constant 0 : i32
    %c0_i32_0 = arith.constant 0 : i32
    return %arg0, %arg1, %c0_i32 : i32, i32, i32
  }
  func.func @transform_1(%arg0: i32, %arg1: i32) -> (i32, i32) {
    %c0_i32 = arith.constant 0 : i32
    %c0_i32_0 = arith.constant 0 : i32
    %c0_i32_1 = arith.constant 0 : i32
    return %c0_i32, %c0_i32_0 : i32, i32
  }
  func.func @transform_2(%arg0: i32, %arg1: i32) -> (i32, i32) {
    %c0_i32 = arith.constant 0 : i32
    %c0_i32_0 = arith.constant 0 : i32
    %c0_i32_1 = arith.constant 0 : i32
    return %c0_i32, %c0_i32_0 : i32, i32
  }
  func.func @transform_3(%arg0: i32, %arg1: i32) -> (i32, i32, i32) {
    %c0_i32 = arith.constant 0 : i32
    %c0_i32_0 = arith.constant 0 : i32
    %c0_i32_1 = arith.constant 0 : i32
    %c0_i32_2 = arith.constant 0 : i32
    return %c0_i32, %c0_i32_0, %c0_i32_1 : i32, i32, i32
  }
  func.func @transform_4(%arg0: i32, %arg1: i32) -> (i32, i32, i32, i32) {
    %c0_i32 = arith.constant 0 : i32
    %c0_i32_0 = arith.constant 0 : i32
    %c0_i32_1 = arith.constant 0 : i32
    return %arg0, %c0_i32, %arg1, %c0_i32_0 : i32, i32, i32, i32
  }
  func.func @transform_5(%arg0: i32, %arg1: i32) -> (i32, i32, i32, i32) {
    %c0_i32 = arith.constant 0 : i32
    %c0_i32_0 = arith.constant 0 : i32
    %c0_i32_1 = arith.constant 0 : i32
    return %arg0, %c0_i32, %arg1, %c0_i32_0 : i32, i32, i32, i32
  }
  func.func @transform_6(%arg0: i32, %arg1: i32) -> (i32, i32, i32, i32) {
    %c0_i32 = arith.constant 0 : i32
    %c0_i32_0 = arith.constant 0 : i32
    %c0_i32_1 = arith.constant 0 : i32
    return %arg0, %c0_i32, %arg1, %c0_i32_0 : i32, i32, i32, i32
  }
}

</mosaic_0001>

<llo_original>
// kernel: tpu_custom_call.1
$region0: #{tpu_custom_call.1}
  #allocation0 [shape = 'u32[]', space=smem, size = 0x4, offset = 0x4, fixed_abs, tag = 'smem constant byte address 0x4 - core index']
  #allocation1 [shape = 'u32[144,128]{1,0:T(1,128)}', space=vmem, size = 0x12000, scoped, tag = 'internal scratch']
  %s0 = inlined_call_operand.vmem [shape: f32[2,8,32], index: 0, kind: input, shape index: {}]
  %s1 = inlined_call_operand.vmem [shape: f32[1,32], index: 1, kind: input, shape index: {}]
  %s2 = inlined_call_operand.vmem [shape: f32[1,32], index: 2, kind: input, shape index: {}]
  %s3 = inlined_call_operand.vmem [shape: bf16[4,32,24], index: 3, kind: input, shape index: {}]
  %s4 = inlined_call_operand.hbm [shape: bf16[2,4,8,8], index: 4, kind: output, shape index: {0}]
  %s5 = inlined_call_operand.hbm [shape: bf16[2,4,8,8], index: 5, kind: output, shape index: {1}]
  %s6 = inlined_call_operand.hbm [shape: bf16[2,4,8,8], index: 6, kind: output, shape index: {2}]
  %7 = xla_tuple %s4, %s5, %s6
  %s8 = sld [smem:[#allocation0]]
  $region65: #{tpu_custom_call.1} parent=0
    _
  %s10 = ssub.s32 1, %s8
  %s11 = scalar_select 0, %s10, %s8
  $region1: #{tpu_custom_call.1} parent=0
    #allocation2 [shape = 'u8[16384]{0}', space=vmem, size = 0x4000, scoped, tag = 'output window, operand 0']
    #allocation3 [shape = 's32[2]{0}', space=sflag, size = 0x8, scoped, tag = 'scoped memory for tpu_custom_call.1']
    #allocation4 [shape = 'u8[16384]{0}', space=vmem, size = 0x4000, scoped, tag = 'output window, operand 1']
    #allocation5 [shape = 's32[2]{0}', space=sflag, size = 0x8, scoped, tag = 'scoped memory for tpu_custom_call.1']
    #allocation6 [shape = 'u8[16384]{0}', space=vmem, size = 0x4000, scoped, tag = 'output window, operand 2']
    %12 = vsyncpa [#allocation3], 0
    %s13 = scalar_lea.sflag [#allocation3], 1
    %14 = vsyncpa %s13, 0
    %15 = vsyncpa [#allocation5], 0
    %s16 = scalar_lea.sflag [#allocation5], 1
    %17 = vsyncpa %s16, 0
    loop: start=0, step=1, limit=4
    $region2: #{tpu_custom_call.1} parent=1 // loop_pre_header
      _
    $region3: #{tpu_custom_call.1} parent=1 // loop_header
      %s19 = sphi 0, %s23
      %p20 = scmp.ge.s32.totalorder %s19, 4
      %s26 = sphi 0, %s38
      %s27 = sphi 0, %s34
      %s28 = sphi 0, %s26
      %s29 = sphi 0, %s27
      %s30 = sphi 0, %s28
      %s31 = sphi 0, %s29
      %s43 = sphi 0, %s45
      %s46 = sphi 0, %s43
      %s47 = sphi 0, %s46
      %s63 = sphi 0, %s47
      %s67 = sphi 0, %s67
      %s69 = sphi 0, %s67
      %s70 = sphi 0, %s69
      %s84 = sphi 0, %s70
      %s88 = sphi 0, %s88
      %s90 = sphi 0, %s88
      %s91 = sphi 0, %s90
      %s105 = sphi 0, %s91
      %s109 = sphi 0, %s109
      %s111 = sphi 0, %s109
      %s112 = sphi 0, %s111
      %s126 = sphi 0, %s112
      %s134 = sphi 0, %s136
      %s137 = sphi 0, %s134
      %s138 = sphi 0, %s137
      %s154 = sphi 0, %s138
      %s162 = sphi 0, %s164
      %s165 = sphi 0, %s162
      %s166 = sphi 0, %s165
      %s182 = sphi 0, %s166
      %s190 = sphi 0, %s192
      %s193 = sphi 0, %s190
      %s194 = sphi 0, %s193
      %s210 = sphi 0, %s194
    $region4: #{tpu_custom_call.1} parent=1 // loop_header_branch
      %22 = sbr.rel (%p20) target = $region8
    $region5: #{tpu_custom_call.1} parent=1 // loop_body
      %s24 = ssub.s32 %s19, 1
      %s25 = ssub.s32 %s19, 2
      %s32 = sadd.s32 1, %s27
      %p33 = scmp.ge.s32.totalorder %s32, 1
      %s34 = scalar_select %p33, 0, %s32
      %s35 = sadd.s32 1, %s26
      %s36 = scalar_select %p33, %s35, %s26
      %p37 = scmp.ge.s32.totalorder %s36, 2
      %s38 = scalar_select %p37, 0, %s36
      %s39 = ssub.s32 %s26, %s38
      %s40 = ssub.s32 %s27, %s34
      %s41 = sor.u32 %s39, %s40
      %p42 = scmp.eq.s32.totalorder %s41, 0
      %s44 = sadd.s32 %s43, 1
      %s45 = scalar_select %p42, %s43, %s44
      %p48 = pneg %p42
      %p49 = scmp.eq.s32.totalorder %s19, 1
      %p50 = por %p48, %p49
      %p51 = scmp.ne.s32.totalorder %s43, %s46
      %p52 = scmp.eq.s32.totalorder %s19, 0
      %p53 = por %p51, %p52
      %p54 = scmp.ne.s32.totalorder %s43, %s46
      %p55 = scmp.eq.s32.totalorder %s24, 1
      %p56 = por %p54, %p55
      %p57 = scmp.ne.s32.totalorder %s46, %s47
      %p58 = scmp.eq.s32.totalorder %s24, 0
      %p59 = por %p57, %p58
      %p60 = scmp.ne.s32.totalorder %s46, %s47
      %p61 = scmp.eq.s32.totalorder %s25, 1
      %p62 = por %p60, %p61
      %p64 = scmp.ne.s32.totalorder %s47, %s63
      %p65 = scmp.eq.s32.totalorder %s25, 0
      %p66 = por %p64, %p65
      %s68 = sadd.s32 %s67, 1
      %p71 = scmp.eq.s32.totalorder %s19, 1
      %p72 = scmp.ne.s32.totalorder %s67, %s69
      %p73 = scmp.eq.s32.totalorder %s19, 0
      %p74 = por %p72, %p73
      %p75 = scmp.ne.s32.totalorder %s67, %s69
      %p76 = scmp.eq.s32.totalorder %s24, 1
      %p77 = por %p75, %p76
      %p78 = scmp.ne.s32.totalorder %s69, %s70
      %p79 = scmp.eq.s32.totalorder %s24, 0
      %p80 = por %p78, %p79
      %p81 = scmp.ne.s32.totalorder %s69, %s70
      %p82 = scmp.eq.s32.totalorder %s25, 1
      %p83 = por %p81, %p82
      %p85 = scmp.ne.s32.totalorder %s70, %s84
      %p86 = scmp.eq.s32.totalorder %s25, 0
      %p87 = por %p85, %p86
      %s89 = sadd.s32 %s88, 1
      %p92 = scmp.eq.s32.totalorder %s19, 1
      %p93 = scmp.ne.s32.totalorder %s88, %s90
      %p94 = scmp.eq.s32.totalorder %s19, 0
      %p95 = por %p93, %p94
      %p96 = scmp.ne.s32.totalorder %s88, %s90
      %p97 = scmp.eq.s32.totalorder %s24, 1
      %p98 = por %p96, %p97
      %p99 = scmp.ne.s32.totalorder %s90, %s91
      %p100 = scmp.eq.s32.totalorder %s24, 0
      %p101 = por %p99, %p100
      %p102 = scmp.ne.s32.totalorder %s90, %s91
      %p103 = scmp.eq.s32.totalorder %s25, 1
      %p104 = por %p102, %p103
      %p106 = scmp.ne.s32.totalorder %s91, %s105
      %p107 = scmp.eq.s32.totalorder %s25, 0
      %p108 = por %p106, %p107
      %s110 = sadd.s32 %s109, 1
      %p113 = scmp.eq.s32.totalorder %s19, 1
      %p114 = scmp.ne.s32.totalorder %s109, %s111
      %p115 = scmp.eq.s32.totalorder %s19, 0
      %p116 = por %p114, %p115
      %p117 = scmp.ne.s32.totalorder %s109, %s111
      %p118 = scmp.eq.s32.totalorder %s24, 1
      %p119 = por %p117, %p118
      %p120 = scmp.ne.s32.totalorder %s111, %s112
      %p121 = scmp.eq.s32.totalorder %s24, 0
      %p122 = por %p120, %p121
      %p123 = scmp.ne.s32.totalorder %s111, %s112
      %p124 = scmp.eq.s32.totalorder %s25, 1
      %p125 = por %p123, %p124
      %p127 = scmp.ne.s32.totalorder %s112, %s126
      %p128 = scmp.eq.s32.totalorder %s25, 0
      %p129 = por %p127, %p128
      %s130 = ssub.s32 %s26, %s38
      %s131 = ssub.s32 %s27, %s34
      %s132 = sor.u32 %s130, %s131
      %p133 = scmp.eq.s32.totalorder %s132, 0
      %s135 = sadd.s32 %s134, 1
      %s136 = scalar_select %p133, %s134, %s135
      %p139 = pneg %p133
      %p140 = scmp.eq.s32.totalorder %s19, 1
      %p141 = por %p139, %p140
      %p142 = scmp.ne.s32.totalorder %s134, %s137
      %p143 = scmp.eq.s32.totalorder %s19, 0
      %p144 = por %p142, %p143
      %p145 = scmp.ne.s32.totalorder %s134, %s137
      %p146 = scmp.eq.s32.totalorder %s24, 1
      %p147 = por %p145, %p146
      %p148 = scmp.ne.s32.totalorder %s137, %s138
      %p149 = scmp.eq.s32.totalorder %s24, 0
      %p150 = por %p148, %p149
      %p151 = scmp.ne.s32.totalorder %s137, %s138
      %p152 = scmp.eq.s32.totalorder %s25, 1
      %p153 = por %p151, %p152
      %p155 = scmp.ne.s32.totalorder %s138, %s154
      %p156 = scmp.eq.s32.totalorder %s25, 0
      %p157 = por %p155, %p156
      %s158 = ssub.s32 %s26, %s38
      %s159 = ssub.s32 %s27, %s34
      %s160 = sor.u32 %s158, %s159
      %p161 = scmp.eq.s32.totalorder %s160, 0
      %s163 = sadd.s32 %s162, 1
      %s164 = scalar_select %p161, %s162, %s163
      %p167 = pneg %p161
      %p168 = scmp.eq.s32.totalorder %s19, 1
      %p169 = por %p167, %p168
      %p170 = scmp.ne.s32.totalorder %s162, %s165
      %p171 = scmp.eq.s32.totalorder %s19, 0
      %p172 = por %p170, %p171
      %p173 = scmp.ne.s32.totalorder %s162, %s165
      %p174 = scmp.eq.s32.totalorder %s24, 1
      %p175 = por %p173, %p174
      %p176 = scmp.ne.s32.totalorder %s165, %s166
      %p177 = scmp.eq.s32.totalorder %s24, 0
      %p178 = por %p176, %p177
      %p179 = scmp.ne.s32.totalorder %s165, %s166
      %p180 = scmp.eq.s32.totalorder %s25, 1
      %p181 = por %p179, %p180
      %p183 = scmp.ne.s32.totalorder %s166, %s182
      %p184 = scmp.eq.s32.totalorder %s25, 0
      %p185 = por %p183, %p184
      %s186 = ssub.s32 %s26, %s38
      %s187 = ssub.s32 %s27, %s34
      %s188 = sor.u32 %s186, %s187
      %p189 = scmp.eq.s32.totalorder %s188, 0
      %s191 = sadd.s32 %s190, 1
      %s192 = scalar_select %p189, %s190, %s191
      %p195 = pneg %p189
      %p196 = scmp.eq.s32.totalorder %s19, 1
      %p197 = por %p195, %p196
      %p198 = scmp.ne.s32.totalorder %s190, %s193
      %p199 = scmp.eq.s32.totalorder %s19, 0
      %p200 = por %p198, %p199
      %p201 = scmp.ne.s32.totalorder %s190, %s193
      %p202 = scmp.eq.s32.totalorder %s24, 1
      %p203 = por %p201, %p202
      %p204 = scmp.ne.s32.totalorder %s193, %s194
      %p205 = scmp.eq.s32.totalorder %s24, 0
      %p206 = por %p204, %p205
      %p207 = scmp.ne.s32.totalorder %s193, %s194
      %p208 = scmp.eq.s32.totalorder %s25, 1
      %p209 = por %p207, %p208
      %p211 = scmp.ne.s32.totalorder %s194, %s210
      %p212 = scmp.eq.s32.totalorder %s25, 0
      %p213 = por %p211, %p212
      %p214 = scmp.le.s32.totalorder 1, %s19
      %p215 = scmp.lt.s32.totalorder %s19, 3
      %p216 = pnand %p214, %p215
      %p217 = pneg %p216
      // Predicated region
      $region9: #{tpu_custom_call.1} parent=5 // pred_check
        _
      $region10: #{tpu_custom_call.1} parent=5 // pred_check_branch
        %219 = sbr.rel (%p216) target = $region12
      $region11: #{tpu_custom_call.1} parent=5 // pred_region
        %s220 = ssub.s32 %s19, 1
        // Predicated region
        $region13: #{tpu_custom_call.1} parent=11 // pred_check
          %p221 = pneg %p80
        $region14: #{tpu_custom_call.1} parent=11 // pred_check_branch
          %223 = sbr.rel (%p221) target = $region16
        $region15: #{tpu_custom_call.1} parent=11 // pred_region
          _
        $region16: #{tpu_custom_call.1} parent=11 // pred_fallthru
          _
        // Predicated region
        $region17: #{tpu_custom_call.1} parent=11 // pred_check
          %p224 = pneg %p101
        $region18: #{tpu_custom_call.1} parent=11 // pred_check_branch
          %226 = sbr.rel (%p224) target = $region20
        $region19: #{tpu_custom_call.1} parent=11 // pred_region
          _
        $region20: #{tpu_custom_call.1} parent=11 // pred_fallthru
          _
        // Predicated region
        $region21: #{tpu_custom_call.1} parent=11 // pred_check
          %p227 = pneg %p122
        $region22: #{tpu_custom_call.1} parent=11 // pred_check_branch
          %229 = sbr.rel (%p227) target = $region24
        $region23: #{tpu_custom_call.1} parent=11 // pred_region
          _
        $region24: #{tpu_custom_call.1} parent=11 // pred_fallthru
          _
      $region12: #{tpu_custom_call.1} parent=5 // pred_fallthru
        _
      %p230 = scmp.lt.s32.totalorder %s19, 2
      // Predicated region
      $region25: #{tpu_custom_call.1} parent=5 // pred_check
        %p231 = pneg %p230
      $region26: #{tpu_custom_call.1} parent=5 // pred_check_branch
        %233 = sbr.rel (%p231) target = $region28
      $region27: #{tpu_custom_call.1} parent=5 // pred_region
        // Predicated region
        $region29: #{tpu_custom_call.1} parent=27 // pred_check
          %p234 = pneg %p53
        $region30: #{tpu_custom_call.1} parent=27 // pred_check_branch
          %236 = sbr.rel (%p234) target = $region32
        $region31: #{tpu_custom_call.1} parent=27 // pred_region
          %p237 = scmp.lt.s32.totalorder %s26, 1
          %s238 = scalar_select %p237, %s26, 1
          %p239 = scmp.lt.s32.totalorder %s27, 0
          %s240 = scalar_select %p239, %s27, 0
          %s241 = sadd.s32 %s240, %s238
          %s242 = smul.addr %s241, 8
          %s243 = scalar_lea.vmem %s0, %s242
        $region32: #{tpu_custom_call.1} parent=27 // pred_fallthru
          _
      $region28: #{tpu_custom_call.1} parent=5 // pred_fallthru
        _
      %p244 = scmp.le.s32.totalorder 1, %s19
      %p245 = scmp.lt.s32.totalorder %s19, 3
      %p246 = pnand %p244, %p245
      %p247 = pneg %p246
      // Predicated region
      $region33: #{tpu_custom_call.1} parent=5 // pred_check
        _
      $region34: #{tpu_custom_call.1} parent=5 // pred_check_branch
        %249 = sbr.rel (%p246) target = $region36
      $region35: #{tpu_custom_call.1} parent=5 // pred_region
        %s250 = ssub.s32 %s19, 1
        %p251 = scmp.lt.s32.totalorder %s28, 1
        %s252 = scalar_select %p251, %s28, 1
        %p253 = scmp.lt.s32.totalorder %s29, 0
        %s254 = scalar_select %p253, %s29, 0
        %s255 = sadd.s32 %s254, %s252
        %s256 = smul.addr %s255, 8
        %s257 = scalar_lea.vmem %s0, %s256
        %p258 = pneg %p59
        %p259 = pneg %p56
        %p260 = pneg %p80
        %p261 = pneg %p77
        %p262 = pneg %p101
        %p263 = pneg %p98
        %p264 = pneg %p122
        %p265 = pneg %p119
        %p266 = pneg %p150
        %p267 = pneg %p147
        %s268 = sand.u32 %s137, 1
        %s269 = scalar_lea.sflag [#allocation3], %s268
        %s270 = sand.u32 %s137, 1
        %s271 = smul.addr %s270, 16
        %s272 = scalar_lea.vmem [#allocation2], %s271
        %p273 = pneg %p178
        %p274 = pneg %p175
        %s275 = sand.u32 %s24, 1
        %s276 = scalar_lea.sflag [#allocation5], %s275
        %s277 = sand.u32 %s165, 1
        %s278 = smul.addr %s277, 16
        %s279 = scalar_lea.vmem [#allocation4], %s278
        %p280 = pneg %p206
        %p281 = pneg %p203
        %s282 = sand.u32 %s24, 1
        %s283 = scalar_lea.sflag [#allocation5], %s282
        %s284 = sand.u32 %s193, 1
        %s285 = smul.addr %s284, 16
        %s286 = scalar_lea.vmem [#allocation6], %s285
        %p287 = scmp.lt.s32.totalorder %s28, 1
        %s288 = scalar_select %p287, %s28, 1
        %p289 = scmp.lt.s32.totalorder %s29, 0
        %s290 = scalar_select %p289, %s29, 0
        %s291 = sadd.s32 %s290, %s288
        %s292 = smul.addr %s291, 8
        %s293 = scalar_lea.vmem %s0, %s292
        %v295 = vld [vmem:[%s293] sm:$0xff]
        %v296 = vld [vmem:[%s1] sm:$0x1]
        %v297 = vld [vmem:[%s2] sm:$0x1]
        %vm298 = vcmask 261120
        %v299 = vsel %vm298, %v295, 0.0
        %300 = vadd.xlane.f32.xlu0 %v299
        %v301 = vpop.xlane.xlu0 %300
        %v302 = vrcp.pop 32.0
        %v303 = vmul.f32 %v301, %v302
        %v304 = vsub.f32 %v295, %v303
        %v305 = vmul.f32 %v304, %v304
        %v306 = vsel %vm298, %v305, 0.0
        %307 = vadd.xlane.f32.xlu0 %v306
        %v308 = vpop.xlane.xlu0 %307
        %v309 = vmul.f32 %v308, %v302
        %v310 = vadd.f32 %v309, 1e-05
        %v311 = vrsqrt.pop %v310
        %v312 = vmul.f32 %v304, %v311
        %v314 = vlaneseq
        %v315 = vshrl.u32 %v314, 7
        %v316 = vsub.s32 0, %v315
        %v317 = vrot.slane %v296, %v316
        %v319 = vmul.f32 %v312, %v317
        %v321 = vlaneseq
        %v322 = vshrl.u32 %v321, 7
        %v323 = vsub.s32 0, %v322
        %v324 = vrot.slane %v297, %v323
        %v326 = vadd.f32 %v319, %v324
        %v327 = vpack.c.bf16 %v326, %v326
        %v328 = vld [vmem:[%s3] sm:$0xf]
        %v329 = vld [vmem:[%s3 + $0x4] sm:$0xf]
        %v330 = vld [vmem:[%s3 + $0x8] sm:$0xf]
        %v331 = vld [vmem:[%s3 + $0xc] sm:$0xf]
        %v336 = vunpack.c.l.b16 %v328
        %v337 = vunpack.c.l.b16 %v329
        %v338 = vunpack.c.l.b16 %v330
        %v339 = vunpack.c.l.b16 %v331
        %v340 = vpack.c.b16 %v337, %v336
        %v341 = vpack.c.b16 %v339, %v338
        %v345 = vsel %vm298, %v327, 0
        %347 = vmatprep.subr.bf16.mxu0 0
        %348 = vmatpush1.bf16.msra.mxu0 %v340
        %349 = vmatprep.subr.bf16.mxu0 0
        %350 = vmatpush1.bf16.msra.mxu0 %v341
        %351 = vmatprep.subr.bf16.mxu0 0
        %352 = vmatpush1.bf16.msra.mxu0 0
        %353 = vmatprep.subr.bf16.mxu0 0
        %354 = vmatpush1.bf16.msra.mxu0 0
        %355 = vmatprep.subr.bf16.mxu0 0
        %356 = vmatpush1.bf16.msra.mxu0 0
        %357 = vmatprep.subr.bf16.mxu0 0
        %358 = vmatpush1.bf16.msra.mxu0 0
        %359 = vmatprep.subr.bf16.mxu0 0
        %360 = vmatpush1.bf16.msra.mxu0 0
        %361 = vmatprep.subr.bf16.mxu0 0
        %362 = vmatpush1.bf16.msra.mxu0 0
        %363 = vmatprep.subr.bf16.mxu0 0
        %364 = vmatpush1.bf16.msra.mxu0 0
        %365 = vmatprep.subr.bf16.mxu0 0
        %366 = vmatpush1.bf16.msra.mxu0 0
        %367 = vmatprep.subr.bf16.mxu0 0
        %368 = vmatpush1.bf16.msra.mxu0 0
        %369 = vmatprep.subr.bf16.mxu0 0
        %370 = vmatpush1.bf16.msra.mxu0 0
        %371 = vmatprep.subr.bf16.mxu0 0
        %372 = vmatpush1.bf16.msra.mxu0 0
        %373 = vmatprep.subr.bf16.mxu0 0
        %374 = vmatpush1.bf16.msra.mxu0 0
        %375 = vmatprep.subr.bf16.mxu0 0
        %376 = vmatpush1.bf16.msra.mxu0 0
        %377 = vmatprep.subr.bf16.mxu0 0
        %378 = vmatpush1.bf16.msra.mxu0 0
        %379 = vmatprep.mubr.bf16.mxu0 0
        %380 = vmatmul.mubr.bf16.gmra.mrb[0].mxu0 %v345
        %v381 = vpop.f32.mrb[0].mxu0
        %v382 = vadd.f32 0.0, %v381
        %v383 = vpop.f32.mrb[0].mxu0
        %v384 = vpop.f32.mrb[0].mxu0
        %v385 = vpop.f32.mrb[0].mxu0
        %386 = vdwg.mxu0
        %v387 = vpack.c.bf16 %v382, %v382
        %vm388 = vcmask 60416
        %389 = vst.msk [vmem:[%s272] sm:$0xf] %vm388, %v387
        %v391 = vunpack.c.l.b16 %v387
        %v392 = vpack.c.b16 %v391, %v391
        %393 = vrot.lane.b32.xlu0 %v392, 120
        %v394 = vpop.permute.xlu0 %393
        %396 = vst.msk [vmem:[%s279] sm:$0xf] %vm388, %v394
        %397 = vrot.lane.b32.xlu0 %v392, 112
        %v398 = vpop.permute.xlu0 %397
        %400 = vst.msk [vmem:[%s286] sm:$0xf] %vm388, %v398
        %s401 = scalar_lea.vmem %s3, 16
        %v402 = vld [vmem:[%s401] sm:$0xf]
        %v403 = vld [vmem:[%s401 + $0x4] sm:$0xf]
        %v404 = vld [vmem:[%s401 + $0x8] sm:$0xf]
        %v405 = vld [vmem:[%s401 + $0xc] sm:$0xf]
        %v410 = vunpack.c.l.b16 %v402
        %v411 = vunpack.c.l.b16 %v403
        %v412 = vunpack.c.l.b16 %v404
        %v413 = vunpack.c.l.b16 %v405
        %v414 = vpack.c.b16 %v411, %v410
        %v415 = vpack.c.b16 %v413, %v412
        %418 = vmatprep.subr.bf16.mxu0 0
        %419 = vmatpush1.bf16.msra.mxu0 %v414
        %420 = vmatprep.subr.bf16.mxu0 0
        %421 = vmatpush1.bf16.msra.mxu0 %v415
        %422 = vmatprep.subr.bf16.mxu0 0
        %423 = vmatpush1.bf16.msra.mxu0 0
        %424 = vmatprep.subr.bf16.mxu0 0
        %425 = vmatpush1.bf16.msra.mxu0 0
        %426 = vmatprep.subr.bf16.mxu0 0
        %427 = vmatpush1.bf16.msra.mxu0 0
        %428 = vmatprep.subr.bf16.mxu0 0
        %429 = vmatpush1.bf16.msra.mxu0 0
        %430 = vmatprep.subr.bf16.mxu0 0
        %431 = vmatpush1.bf16.msra.mxu0 0
        %432 = vmatprep.subr.bf16.mxu0 0
        %433 = vmatpush1.bf16.msra.mxu0 0
        %434 = vmatprep.subr.bf16.mxu0 0
        %435 = vmatpush1.bf16.msra.mxu0 0
        %436 = vmatprep.subr.bf16.mxu0 0
        %437 = vmatpush1.bf16.msra.mxu0 0
        %438 = vmatprep.subr.bf16.mxu0 0
        %439 = vmatpush1.bf16.msra.mxu0 0
        %440 = vmatprep.subr.bf16.mxu0 0
        %441 = vmatpush1.bf16.msra.mxu0 0
        %442 = vmatprep.subr.bf16.mxu0 0
        %443 = vmatpush1.bf16.msra.mxu0 0
        %444 = vmatprep.subr.bf16.mxu0 0
        %445 = vmatpush1.bf16.msra.mxu0 0
        %446 = vmatprep.subr.bf16.mxu0 0
        %447 = vmatpush1.bf16.msra.mxu0 0
        %448 = vmatprep.subr.bf16.mxu0 0
        %449 = vmatpush1.bf16.msra.mxu0 0
        %450 = vmatprep.mubr.bf16.mxu0 0
        %451 = vmatmul.mubr.bf16.gmra.mrb[0].mxu0 %v345
        %v452 = vpop.f32.mrb[0].mxu0
        %v453 = vadd.f32 0.0, %v452
        %v454 = vpop.f32.mrb[0].mxu0
        %v455 = vpop.f32.mrb[0].mxu0
        %v456 = vpop.f32.mrb[0].mxu0
        %457 = vdwg.mxu0
        %v458 = vpack.c.bf16 %v453, %v453
        %s459 = scalar_lea.vmem %s272, 4 [#allocation2]
        %460 = vst.msk [vmem:[%s459] sm:$0xf] %vm388, %v458
        %v462 = vunpack.c.l.b16 %v458
        %v463 = vpack.c.b16 %v462, %v462
        %464 = vrot.lane.b32.xlu0 %v463, 120
        %v465 = vpop.permute.xlu0 %464
        %s467 = scalar_lea.vmem %s279, 4 [#allocation4]
        %468 = vst.msk [vmem:[%s467] sm:$0xf] %vm388, %v465
        %469 = vrot.lane.b32.xlu0 %v463, 112
        %v470 = vpop.permute.xlu0 %469
        %s472 = scalar_lea.vmem %s286, 4 [#allocation6]
        %473 = vst.msk [vmem:[%s472] sm:$0xf] %vm388, %v470
        %s474 = scalar_lea.vmem %s3, 32
        %v475 = vld [vmem:[%s474] sm:$0xf]
        %v476 = vld [vmem:[%s474 + $0x4] sm:$0xf]
        %v477 = vld [vmem:[%s474 + $0x8] sm:$0xf]
        %v478 = vld [vmem:[%s474 + $0xc] sm:$0xf]
        %v483 = vunpack.c.l.b16 %v475
        %v484 = vunpack.c.l.b16 %v476
        %v485 = vunpack.c.l.b16 %v477
        %v486 = vunpack.c.l.b16 %v478
        %v487 = vpack.c.b16 %v484, %v483
        %v488 = vpack.c.b16 %v486, %v485
        %491 = vmatprep.subr.bf16.mxu0 0
        %492 = vmatpush1.bf16.msra.mxu0 %v487
        %493 = vmatprep.subr.bf16.mxu0 0
        %494 = vmatpush1.bf16.msra.mxu0 %v488
        %495 = vmatprep.subr.bf16.mxu0 0
        %496 = vmatpush1.bf16.msra.mxu0 0
        %497 = vmatprep.subr.bf16.mxu0 0
        %498 = vmatpush1.bf16.msra.mxu0 0
        %499 = vmatprep.subr.bf16.mxu0 0
        %500 = vmatpush1.bf16.msra.mxu0 0
        %501 = vmatprep.subr.bf16.mxu0 0
        %502 = vmatpush1.bf16.msra.mxu0 0
        %503 = vmatprep.subr.bf16.mxu0 0
        %504 = vmatpush1.bf16.msra.mxu0 0
        %505 = vmatprep.subr.bf16.mxu0 0
        %506 = vmatpush1.bf16.msra.mxu0 0
        %507 = vmatprep.subr.bf16.mxu0 0
        %508 = vmatpush1.bf16.msra.mxu0 0
        %509 = vmatprep.subr.bf16.mxu0 0
        %510 = vmatpush1.bf16.msra.mxu0 0
        %511 = vmatprep.subr.bf16.mxu0 0
        %512 = vmatpush1.bf16.msra.mxu0 0
        %513 = vmatprep.subr.bf16.mxu0 0
        %514 = vmatpush1.bf16.msra.mxu0 0
        %515 = vmatprep.subr.bf16.mxu0 0
        %516 = vmatpush1.bf16.msra.mxu0 0
        %517 = vmatprep.subr.bf16.mxu0 0
        %518 = vmatpush1.bf16.msra.mxu0 0
        %519 = vmatprep.subr.bf16.mxu0 0
        %520 = vmatpush1.bf16.msra.mxu0 0
        %521 = vmatprep.subr.bf16.mxu0 0
        %522 = vmatpush1.bf16.msra.mxu0 0
        %523 = vmatprep.mubr.bf16.mxu0 0
        %524 = vmatmul.mubr.bf16.gmra.mrb[0].mxu0 %v345
        %v525 = vpop.f32.mrb[0].mxu0
        %v526 = vadd.f32 0.0, %v525
        %v527 = vpop.f32.mrb[0].mxu0
        %v528 = vpop.f32.mrb[0].mxu0
        %v529 = vpop.f32.mrb[0].mxu0
        %530 = vdwg.mxu0
        %v531 = vpack.c.bf16 %v526, %v526
        %s532 = scalar_lea.vmem %s272, 8 [#allocation2]
        %533 = vst.msk [vmem:[%s532] sm:$0xf] %vm388, %v531
        %v535 = vunpack.c.l.b16 %v531
        %v536 = vpack.c.b16 %v535, %v535
        %537 = vrot.lane.b32.xlu0 %v536, 120
        %v538 = vpop.permute.xlu0 %537
        %s540 = scalar_lea.vmem %s279, 8 [#allocation4]
        %541 = vst.msk [vmem:[%s540] sm:$0xf] %vm388, %v538
        %542 = vrot.lane.b32.xlu0 %v536, 112
        %v543 = vpop.permute.xlu0 %542
        %s545 = scalar_lea.vmem %s286, 8 [#allocation6]
        %546 = vst.msk [vmem:[%s545] sm:$0xf] %vm388, %v543
        %s547 = scalar_lea.vmem %s3, 48
        %v548 = vld [vmem:[%s547] sm:$0xf]
        %v549 = vld [vmem:[%s547 + $0x4] sm:$0xf]
        %v550 = vld [vmem:[%s547 + $0x8] sm:$0xf]
        %v551 = vld [vmem:[%s547 + $0xc] sm:$0xf]
        %v556 = vunpack.c.l.b16 %v548
        %v557 = vunpack.c.l.b16 %v549
        %v558 = vunpack.c.l.b16 %v550
        %v559 = vunpack.c.l.b16 %v551
        %v560 = vpack.c.b16 %v557, %v556
        %v561 = vpack.c.b16 %v559, %v558
        %564 = vmatprep.subr.bf16.mxu0 0
        %565 = vmatpush1.bf16.msra.mxu0 %v560
        %566 = vmatprep.subr.bf16.mxu0 0
        %567 = vmatpush1.bf16.msra.mxu0 %v561
        %568 = vmatprep.subr.bf16.mxu0 0
        %569 = vmatpush1.bf16.msra.mxu0 0
        %570 = vmatprep.subr.bf16.mxu0 0
        %571 = vmatpush1.bf16.msra.mxu0 0
        %572 = vmatprep.subr.bf16.mxu0 0
        %573 = vmatpush1.bf16.msra.mxu0 0
        %574 = vmatprep.subr.bf16.mxu0 0
        %575 = vmatpush1.bf16.msra.mxu0 0
        %576 = vmatprep.subr.bf16.mxu0 0
        %577 = vmatpush1.bf16.msra.mxu0 0
        %578 = vmatprep.subr.bf16.mxu0 0
        %579 = vmatpush1.bf16.msra.mxu0 0
        %580 = vmatprep.subr.bf16.mxu0 0
        %581 = vmatpush1.bf16.msra.mxu0 0
        %582 = vmatprep.subr.bf16.mxu0 0
        %583 = vmatpush1.bf16.msra.mxu0 0
        %584 = vmatprep.subr.bf16.mxu0 0
        %585 = vmatpush1.bf16.msra.mxu0 0
        %586 = vmatprep.subr.bf16.mxu0 0
        %587 = vmatpush1.bf16.msra.mxu0 0
        %588 = vmatprep.subr.bf16.mxu0 0
        %589 = vmatpush1.bf16.msra.mxu0 0
        %590 = vmatprep.subr.bf16.mxu0 0
        %591 = vmatpush1.bf16.msra.mxu0 0
        %592 = vmatprep.subr.bf16.mxu0 0
        %593 = vmatpush1.bf16.msra.mxu0 0
        %594 = vmatprep.subr.bf16.mxu0 0
        %595 = vmatpush1.bf16.msra.mxu0 0
        %596 = vmatprep.mubr.bf16.mxu0 0
        %597 = vmatmul.mubr.bf16.gmra.mrb[0].mxu0 %v345
        %v598 = vpop.f32.mrb[0].mxu0
        %v599 = vadd.f32 0.0, %v598
        %v600 = vpop.f32.mrb[0].mxu0
        %v601 = vpop.f32.mrb[0].mxu0
        %v602 = vpop.f32.mrb[0].mxu0
        %603 = vdwg.mxu0
        %v604 = vpack.c.bf16 %v599, %v599
        %s605 = scalar_lea.vmem %s272, 12 [#allocation2]
        %606 = vst.msk [vmem:[%s605] sm:$0xf] %vm388, %v604
        %v608 = vunpack.c.l.b16 %v604
        %v609 = vpack.c.b16 %v608, %v608
        %610 = vrot.lane.b32.xlu0 %v609, 120
        %v611 = vpop.permute.xlu0 %610
        %s613 = scalar_lea.vmem %s279, 12 [#allocation4]
        %614 = vst.msk [vmem:[%s613] sm:$0xf] %vm388, %v611
        %615 = vrot.lane.b32.xlu0 %v609, 112
        %v616 = vpop.permute.xlu0 %615
        %s618 = scalar_lea.vmem %s286, 12 [#allocation6]
        %619 = vst.msk [vmem:[%s618] sm:$0xf] %vm388, %v616
        %s620 = sand.u32 %s137, 1
        %s621 = scalar_lea.sflag [#allocation3], %s620
        %s622 = sand.u32 %s137, 1
        %s623 = smul.addr %s622, 16
        %s624 = scalar_lea.vmem [#allocation2], %s623
        %s625 = sand.u32 %s24, 1
        %s626 = scalar_lea.sflag [#allocation5], %s625
        %s627 = sand.u32 %s165, 1
        %s628 = smul.addr %s627, 16
        %s629 = scalar_lea.vmem [#allocation4], %s628
        %s630 = sand.u32 %s24, 1
        %s631 = scalar_lea.sflag [#allocation5], %s630
        %s632 = sand.u32 %s193, 1
        %s633 = smul.addr %s632, 16
        %s634 = scalar_lea.vmem [#allocation6], %s633
        // Predicated region
        $region37: #{tpu_custom_call.1} parent=35 // pred_check
          %p635 = pneg %p147
        $region38: #{tpu_custom_call.1} parent=35 // pred_check_branch
          %637 = sbr.rel (%p635) target = $region40
        $region39: #{tpu_custom_call.1} parent=35 // pred_region
          %s639 = ssub.s32 256, 256
          %640 = vsyncadd %s621, %s639
          %s641 = smul.addr %s28, 4
          %s642 = sadd.s32 %s29, %s641
          %s643 = smul.addr %s642, 64
          %s644 = scalar_lea.hbm %s4, %s643
          %s645 = sshll.u32 %s624, 4
          %s646 = int_to_ptr.vmem [resolvable:$true] %s645
          %651 = dma.vmem_to_hbm [thread:$0]  %s646, 256, %s644, %s621, 64, 64, 4
        $region40: #{tpu_custom_call.1} parent=35 // pred_fallthru
          _
        // Predicated region
        $region41: #{tpu_custom_call.1} parent=35 // pred_check
          %p652 = pneg %p175
        $region42: #{tpu_custom_call.1} parent=35 // pred_check_branch
          %654 = sbr.rel (%p652) target = $region44
        $region43: #{tpu_custom_call.1} parent=35 // pred_region
          %s656 = ssub.s32 256, 256
          %657 = vsyncadd %s626, %s656
          %s658 = smul.addr %s28, 4
          %s659 = sadd.s32 %s29, %s658
          %s660 = smul.addr %s659, 64
          %s661 = scalar_lea.hbm %s5, %s660
          %s662 = sshll.u32 %s629, 4
          %s663 = int_to_ptr.vmem [resolvable:$true] %s662
          %668 = dma.vmem_to_hbm [thread:$0]  %s663, 256, %s661, %s626, 64, 64, 4
        $region44: #{tpu_custom_call.1} parent=35 // pred_fallthru
          _
        // Predicated region
        $region45: #{tpu_custom_call.1} parent=35 // pred_check
          %p669 = pneg %p203
        $region46: #{tpu_custom_call.1} parent=35 // pred_check_branch
          %671 = sbr.rel (%p669) target = $region48
        $region47: #{tpu_custom_call.1} parent=35 // pred_region
          %s673 = ssub.s32 256, 256
          %674 = vsyncadd %s631, %s673
          %s675 = smul.addr %s28, 4
          %s676 = sadd.s32 %s29, %s675
          %s677 = smul.addr %s676, 64
          %s678 = scalar_lea.hbm %s6, %s677
          %s679 = sshll.u32 %s634, 4
          %s680 = int_to_ptr.vmem [resolvable:$true] %s679
          %685 = dma.vmem_to_hbm [thread:$0]  %s680, 256, %s678, %s631, 64, 64, 4
        $region48: #{tpu_custom_call.1} parent=35 // pred_fallthru
          _
      $region36: #{tpu_custom_call.1} parent=5 // pred_fallthru
        _
      %p686 = scmp.le.s32.totalorder 2, %s19
      // Predicated region
      $region49: #{tpu_custom_call.1} parent=5 // pred_check
        %p687 = pneg %p686
      $region50: #{tpu_custom_call.1} parent=5 // pred_check_branch
        %689 = sbr.rel (%p687) target = $region52
      $region51: #{tpu_custom_call.1} parent=5 // pred_region
        %s690 = ssub.s32 %s19, 2
        // Predicated region
        $region53: #{tpu_custom_call.1} parent=51 // pred_check
          %p691 = pneg %p153
        $region54: #{tpu_custom_call.1} parent=51 // pred_check_branch
          %693 = sbr.rel (%p691) target = $region56
        $region55: #{tpu_custom_call.1} parent=51 // pred_region
          %s694 = sand.u32 %s138, 1
          %s695 = scalar_lea.sflag [#allocation3], %s694
          %s696 = sand.u32 %s138, 1
          %s697 = smul.addr %s696, 16
          %s698 = scalar_lea.vmem [#allocation2], %s697
          %699 = dma.done %s695, 256
        $region56: #{tpu_custom_call.1} parent=51 // pred_fallthru
          _
        // Predicated region
        $region57: #{tpu_custom_call.1} parent=51 // pred_check
          %p700 = pneg %p181
        $region58: #{tpu_custom_call.1} parent=51 // pred_check_branch
          %702 = sbr.rel (%p700) target = $region60
        $region59: #{tpu_custom_call.1} parent=51 // pred_region
          %s703 = sand.u32 %s25, 1
          %s704 = scalar_lea.sflag [#allocation5], %s703
          %s705 = sand.u32 %s166, 1
          %s706 = smul.addr %s705, 16
          %s707 = scalar_lea.vmem [#allocation4], %s706
          %708 = dma.done %s704, 256
        $region60: #{tpu_custom_call.1} parent=51 // pred_fallthru
          _
        // Predicated region
        $region61: #{tpu_custom_call.1} parent=51 // pred_check
          %p709 = pneg %p209
        $region62: #{tpu_custom_call.1} parent=51 // pred_check_branch
          %711 = sbr.rel (%p709) target = $region64
        $region63: #{tpu_custom_call.1} parent=51 // pred_region
          %s712 = sand.u32 %s25, 1
          %s713 = scalar_lea.sflag [#allocation5], %s712
          %s714 = sand.u32 %s194, 1
          %s715 = smul.addr %s714, 16
          %s716 = scalar_lea.vmem [#allocation6], %s715
          %717 = dma.done %s713, 256
        $region64: #{tpu_custom_call.1} parent=51 // pred_fallthru
          _
      $region52: #{tpu_custom_call.1} parent=5 // pred_fallthru
        _
    $region6: #{tpu_custom_call.1} parent=1 // loop_footer
      %s23 = sadd.s32 1, %s19
    $region7: #{tpu_custom_call.1} parent=1 // loop_footer_branch
      %18 = sbr.rel target = $region3
    $region8: #{tpu_custom_call.1} parent=1 // loop_exit
      _
    %718 = vsyncpa [#allocation3], 1
    %s719 = scalar_lea.sflag [#allocation3], 1
    %720 = vsyncpa %s719, 1
    %721 = vsyncpa [#allocation5], 1
    %s722 = scalar_lea.sflag [#allocation5], 1
    %723 = vsyncpa %s722, 1

</llo_original>
